<compile_context>
chip_gen: v7x
topology: tpu7x:2x2x1
jax: 0.10.0
libtpu: 0.0.40
codegen_flags: <defaults>
</compile_context>

<pallas_src>
from functools import partial

import jax
import jax.numpy as jnp
from jax.experimental import pallas as pl
from jax.experimental.pallas import tpu as pltpu


def _round_up(x, m):
    return (x + m - 1) // m * m


# ---------------------------------------------------------------------------
# Pallas kernel
# ---------------------------------------------------------------------------

def _contrastive_loss_kernel(x_ref, xt_ref, lab_row_ref, lab_col_ref, o_ref, *, margin):
    j = pl.program_id(1)

    @pl.when(j == 0)
    def _init():
        o_ref[...] = jnp.zeros_like(o_ref)

    # (bm, d) bf16 @ (d, bn) bf16 -> f32 accumulate on the MXU.
    sim = jnp.dot(x_ref[...], xt_ref[...], preferred_element_type=jnp.float32)

    # Label comparison via broadcast of tiny int32 vectors; no (n,n) mask in HBM.
    same = lab_row_ref[...] == lab_col_ref[...]                 # (bm, bn)

    # Nested select: pos pairs add (1 - sim) when sim < 1, neg pairs add sim when
    # sim > margin.  Padded rows/cols carry sentinel labels (never "same") and
    # zero features (sim == 0), so padding contributes exactly 0 for any margin.
    contrib = jnp.where(same,
                        jnp.where(sim < 1.0, 1.0 - sim, 0.0),
                        jnp.where(sim > margin, sim, 0.0))

    # Fold (bm, bn) -> (8, 128) with static, (8,128)-aligned slices: pure VPU adds,
    # no cross-lane/sublane XLU reduce and no sub-vreg store inside the grid loop.
    bm, bn = contrib.shape
    part = contrib[0:8, :]
    for r in range(1, bm // 8):
        part = part + contrib[r * 8:(r + 1) * 8, :]
    acc = part[:, 0:128]
    for g in range(1, bn // 128):
        acc = acc + part[:, g * 128:(g + 1) * 128]

    o_ref[...] += acc


# ---------------------------------------------------------------------------
# Wrapper
# ---------------------------------------------------------------------------

def contrastive_loss(inputs, targets, *, margin=0.3):
    """ContrastiveLoss.forward. inputs: (n, d) float features, targets: (n,) int ids."""
    assert inputs.ndim == 2 and targets.ndim == 1 and inputs.shape[0] == targets.shape[0]
    n, d = inputs.shape

    # Tile sizes: fill the MXU M dimension (256 native on v6e/v7x); small batches
    # collapse to a single grid step.  block_cols is kept a multiple of block_rows
    # so one padded size serves both grid axes.
    rnd = _round_up(n, 128)
    block_rows = min(rnd, 256)
    block_cols = min(rnd, 512)
    if block_cols % block_rows:
        block_cols = block_rows
    n_pad = _round_up(n, max(block_rows, block_cols))
    d_pad = _round_up(d, 128)
    row_tiles = n_pad // block_rows
    col_tiles = n_pad // block_cols

    # Single zero-padded bf16 copy of the features; its one transpose is the MXU RHS.
    x_pad = jnp.zeros((n_pad, d_pad), jnp.bfloat16).at[:n, :d].set(
        inputs.astype(jnp.bfloat16))
    xt = x_pad.T                                                 # (d_pad, n_pad)

    # Labels with distinct out-of-range sentinels for row / column padding.
    lab = targets.astype(jnp.int32)
    sent = jnp.min(lab)
    lab_row = jnp.full((n_pad, 1), sent - 1, jnp.int32).at[:n, 0].set(lab)
    lab_col = jnp.full((1, n_pad), sent - 2, jnp.int32).at[0, :n].set(lab)

    # Rough VMEM footprint: double-buffered bf16 inputs + f32 sim/contrib headroom.
    # Only raise the scoped-VMEM limit when the default would be too small
    # (important for v5e's 16 MiB and v7x's 32 MiB scoped defaults).
    est = (2 * 2 * (block_rows + block_cols) * d_pad            # bf16 input blocks (x2 buf)
           + 2 * 4 * (block_rows + block_cols)                  # label blocks
           + 2 * 4 * 8 * 128                                    # output block
           + 8 * 4 * block_rows * block_cols)                   # f32 intermediates
    vmem_limit = int(min(2 * est, 64 * 2 ** 20)) if est > 24 * 2 ** 20 else None

    out = pl.pallas_call(
        partial(_contrastive_loss_kernel, margin=float(margin)),
        out_shape=jax.ShapeDtypeStruct((row_tiles * 8, 128), jnp.float32),
        grid=(row_tiles, col_tiles),
        in_specs=[
            pl.BlockSpec((block_rows, d_pad), lambda i, j: (i, 0)),   # X row tile
            pl.BlockSpec((d_pad, block_cols), lambda i, j: (0, j)),   # X^T col tile
            pl.BlockSpec((block_rows, 1), lambda i, j: (i, 0)),       # row labels
            pl.BlockSpec((1, block_cols), lambda i, j: (0, j)),       # col labels
        ],
        # Lane-dense per-row-tile partial sums; resident across the col axis.
        out_specs=pl.BlockSpec((8, 128), lambda i, j: (i, 0)),
        compiler_params=pltpu.CompilerParams(
            dimension_semantics=("parallel", "arbitrary"),
            vmem_limit_bytes=vmem_limit),
    )(x_pad, xt, lab_row, lab_col)

    # Tiny final reduction + mean over rows done in XLA.
    return jnp.sum(out) * (1.0 / float(n))


# ---------------------------------------------------------------------------
# Pure-JAX reference (mirrors the PyTorch loop; sorting is a no-op for the sums)
# ---------------------------------------------------------------------------

def contrastive_loss_ref(inputs, targets, margin=0.3):
    x = inputs.astype(jnp.float32)
    sim = x @ x.T
    same = targets[:, None] == targets[None, :]
    pos = jnp.where(same & (sim < 1.0), 1.0 - sim, 0.0)
    neg = jnp.where(jnp.logical_not(same) & (sim > margin), sim, 0.0)
    return (jnp.sum(pos) + jnp.sum(neg)) / x.shape[0]


# ---------------------------------------------------------------------------

if __name__ == "__main__":
    key = jax.random.PRNGKey(0)
    k1, k2, k3, k4, k5, k6 = jax.random.split(key, 6)

    def check(feats, targets, margin=0.3):
        loss = jax.jit(partial(contrastive_loss, margin=margin))(feats, targets)
        jax.block_until_ready(loss)
        ref = contrastive_loss_ref(feats, targets, margin)
        assert bool(jnp.isfinite(loss))
        assert abs(float(loss) - float(ref)) <= 5e-2 + 2e-2 * abs(float(ref)), \
            (float(loss), float(ref))

    # Case 1: ReID-like batch, 32 x 128 L2-normalized features, 4 identities.
    # Single (1,1) grid step with a full 128-row MXU tile.
    n, d = 32, 128
    f1 = jax.random.normal(k1, (n, d), jnp.float32)
    f1 = f1 / jnp.linalg.norm(f1, axis=1, keepdims=True)
    t1 = jax.random.randint(k2, (n,), 0, 4)
    check(f1, t1)

    # Case 2: ragged dims exercising row / column / feature zero-padding and sentinels.
    n2, d2 = 10, 40
    f2 = jax.random.normal(k3, (n2, d2), jnp.float32)
    f2 = f2 / jnp.linalg.norm(f2, axis=1, keepdims=True)
    t2 = jax.random.randint(k4, (n2,), 0, 3)
    check(f2, t2)

    # Case 3: multi-tile 2-D grid (2 row tiles x 2 col tiles) exercising the
    # cross-col-tile accumulation and per-row-tile partial outputs.
    n3, d3 = 300, 96
    f3 = jax.random.normal(k5, (n3, d3), jnp.float32)
    f3 = f3 / jnp.linalg.norm(f3, axis=1, keepdims=True)
    t3 = jax.random.randint(k6, (n3,), 0, 10)
    check(f3, t3)

    print("KERNEL_OK")
</pallas_src>

<mosaic_0001>
module attributes {stable_mosaic.version = 11 : i64} {
  func.func @_contrastive_loss_kernel(%arg0: i32, %arg1: i32, %arg2: memref<128x128xbf16, #tpu.memory_space<vmem>>, %arg3: memref<128x128xbf16, #tpu.memory_space<vmem>>, %arg4: memref<128x1xi32, #tpu.memory_space<vmem>>, %arg5: memref<1x128xi32, #tpu.memory_space<vmem>>, %arg6: memref<8x128xf32, #tpu.memory_space<vmem>>) attributes {dimension_semantics = [#tpu.dimension_semantics<parallel>, #tpu.dimension_semantics<arbitrary>], iteration_bounds = array<i64: 1, 1>, scalar_prefetch = 0 : i64, scratch_operands = 0 : i64, tpu.core_type = #tpu.core_type<tc>, window_params = [{transform_indices = @transform_0, window_bounds = array<i64: 128, 128>}, {transform_indices = @transform_1, window_bounds = array<i64: 128, 128>}, {transform_indices = @transform_2, window_bounds = array<i64: 128, 1>}, {transform_indices = @transform_3, window_bounds = array<i64: 1, 128>}, {transform_indices = @transform_4, window_bounds = array<i64: 8, 128>}]} {
    %c0_i32 = arith.constant 0 : i32
    %0 = arith.cmpi eq, %arg1, %c0_i32 : i32
    %1 = arith.extui %0 : i1 to i32
    %c0_i32_0 = arith.constant 0 : i32
    %2 = arith.cmpi ne, %1, %c0_i32_0 : i32
    scf.if %2 {
      %cst_17 = arith.constant 0.000000e+00 : f32
      %56 = vector.broadcast %cst_17 : f32 to vector<8x128xf32>
      %c0_18 = arith.constant 0 : index
      %c0_19 = arith.constant 0 : index
      %57 = vector.load %arg6[%c0_18, %c0_19] : memref<8x128xf32, #tpu.memory_space<vmem>>, vector<8x128xf32>
      tpu.vector_store %arg6[%c0_18, %c0_19], %56 {strides = array<i32>} : memref<8x128xf32, #tpu.memory_space<vmem>>, vector<8x128xf32>,
    } else {
    }
    %c0 = arith.constant 0 : index
    %c0_1 = arith.constant 0 : index
    %3 = vector.load %arg2[%c0, %c0_1] : memref<128x128xbf16, #tpu.memory_space<vmem>>, vector<128x128xbf16>
    %c0_2 = arith.constant 0 : index
    %c0_3 = arith.constant 0 : index
    %4 = vector.load %arg3[%c0_2, %c0_3] : memref<128x128xbf16, #tpu.memory_space<vmem>>, vector<128x128xbf16>
    %cst = arith.constant dense<0.000000e+00> : vector<128x128xf32>
    %5 = tpu.matmul %3, %4, %cst {dimension_numbers = #tpu.dot_dimension_numbers<[1], [0], [0], [1], [0, 0, 1, 1], [], []>} : vector<128x128xbf16>, vector<128x128xbf16>, vector<128x128xf32> -> vector<128x128xf32>
    %c0_4 = arith.constant 0 : index
    %c0_5 = arith.constant 0 : index
    %6 = vector.load %arg4[%c0_4, %c0_5] : memref<128x1xi32, #tpu.memory_space<vmem>>, vector<128x1xi32>
    %c0_6 = arith.constant 0 : index
    %c0_7 = arith.constant 0 : index
    %7 = vector.load %arg5[%c0_6, %c0_7] : memref<1x128xi32, #tpu.memory_space<vmem>>, vector<1x128xi32>
    %8 = vector.broadcast %6 : vector<128x1xi32> to vector<128x128xi32>
    %9 = vector.broadcast %7 : vector<1x128xi32> to vector<128x128xi32>
    %10 = arith.cmpi eq, %8, %9 : vector<128x128xi32>
    %cst_8 = arith.constant 1.000000e+00 : f32
    %11 = vector.broadcast %cst_8 : f32 to vector<128x128xf32>
    %12 = arith.cmpf olt, %5, %11 : vector<128x128xf32>
    %cst_9 = arith.constant 1.000000e+00 : f32
    %13 = vector.broadcast %cst_9 : f32 to vector<128x128xf32>
    %14 = arith.subf %13, %5 : vector<128x128xf32>
    %cst_10 = arith.constant 0.000000e+00 : f32
    %15 = vector.broadcast %cst_10 : f32 to vector<128x128xf32>
    %16 = arith.select %12, %14, %15 : vector<128x128xi1>, vector<128x128xf32>
    %cst_11 = arith.constant 3.000000e-01 : f32
    %17 = vector.broadcast %cst_11 : f32 to vector<128x128xf32>
    %18 = arith.cmpf ogt, %5, %17 : vector<128x128xf32>
    %cst_12 = arith.constant 0.000000e+00 : f32
    %19 = vector.broadcast %cst_12 : f32 to vector<128x128xf32>
    %20 = arith.select %18, %5, %19 : vector<128x128xi1>, vector<128x128xf32>
    %21 = arith.select %10, %16, %20 : vector<128x128xi1>, vector<128x128xf32>
    %22 = vector.extract_strided_slice %21 {offsets = [0, 0], sizes = [8, 128], strides = [1, 1]} : vector<128x128xf32> to vector<8x128xf32>
    %23 = vector.extract_strided_slice %21 {offsets = [8, 0], sizes = [8, 128], strides = [1, 1]} : vector<128x128xf32> to vector<8x128xf32>
    %24 = arith.addf %22, %23 : vector<8x128xf32>
    %25 = vector.extract_strided_slice %21 {offsets = [16, 0], sizes = [8, 128], strides = [1, 1]} : vector<128x128xf32> to vector<8x128xf32>
    %26 = arith.addf %24, %25 : vector<8x128xf32>
    %27 = vector.extract_strided_slice %21 {offsets = [24, 0], sizes = [8, 128], strides = [1, 1]} : vector<128x128xf32> to vector<8x128xf32>
    %28 = arith.addf %26, %27 : vector<8x128xf32>
    %29 = vector.extract_strided_slice %21 {offsets = [32, 0], sizes = [8, 128], strides = [1, 1]} : vector<128x128xf32> to vector<8x128xf32>
    %30 = arith.addf %28, %29 : vector<8x128xf32>
    %31 = vector.extract_strided_slice %21 {offsets = [40, 0], sizes = [8, 128], strides = [1, 1]} : vector<128x128xf32> to vector<8x128xf32>
    %32 = arith.addf %30, %31 : vector<8x128xf32>
    %33 = vector.extract_strided_slice %21 {offsets = [48, 0], sizes = [8, 128], strides = [1, 1]} : vector<128x128xf32> to vector<8x128xf32>
    %34 = arith.addf %32, %33 : vector<8x128xf32>
    %35 = vector.extract_strided_slice %21 {offsets = [56, 0], sizes = [8, 128], strides = [1, 1]} : vector<128x128xf32> to vector<8x128xf32>
    %36 = arith.addf %34, %35 : vector<8x128xf32>
    %37 = vector.extract_strided_slice %21 {offsets = [64, 0], sizes = [8, 128], strides = [1, 1]} : vector<128x128xf32> to vector<8x128xf32>
    %38 = arith.addf %36, %37 : vector<8x128xf32>
    %39 = vector.extract_strided_slice %21 {offsets = [72, 0], sizes = [8, 128], strides = [1, 1]} : vector<128x128xf32> to vector<8x128xf32>
    %40 = arith.addf %38, %39 : vector<8x128xf32>
    %41 = vector.extract_strided_slice %21 {offsets = [80, 0], sizes = [8, 128], strides = [1, 1]} : vector<128x128xf32> to vector<8x128xf32>
    %42 = arith.addf %40, %41 : vector<8x128xf32>
    %43 = vector.extract_strided_slice %21 {offsets = [88, 0], sizes = [8, 128], strides = [1, 1]} : vector<128x128xf32> to vector<8x128xf32>
    %44 = arith.addf %42, %43 : vector<8x128xf32>
    %45 = vector.extract_strided_slice %21 {offsets = [96, 0], sizes = [8, 128], strides = [1, 1]} : vector<128x128xf32> to vector<8x128xf32>
    %46 = arith.addf %44, %45 : vector<8x128xf32>
    %47 = vector.extract_strided_slice %21 {offsets = [104, 0], sizes = [8, 128], strides = [1, 1]} : vector<128x128xf32> to vector<8x128xf32>
    %48 = arith.addf %46, %47 : vector<8x128xf32>
    %49 = vector.extract_strided_slice %21 {offsets = [112, 0], sizes = [8, 128], strides = [1, 1]} : vector<128x128xf32> to vector<8x128xf32>
    %50 = arith.addf %48, %49 : vector<8x128xf32>
    %51 = vector.extract_strided_slice %21 {offsets = [120, 0], sizes = [8, 128], strides = [1, 1]} : vector<128x128xf32> to vector<8x128xf32>
    %52 = arith.addf %50, %51 : vector<8x128xf32>
    %c0_13 = arith.constant 0 : index
    %c0_14 = arith.constant 0 : index
    %53 = vector.load %arg6[%c0_13, %c0_14] : memref<8x128xf32, #tpu.memory_space<vmem>>, vector<8x128xf32>
    %54 = arith.addf %53, %52 : vector<8x128xf32>
    %c0_15 = arith.constant 0 : index
    %c0_16 = arith.constant 0 : index
    %55 = vector.load %arg6[%c0_15, %c0_16] : memref<8x128xf32, #tpu.memory_space<vmem>>, vector<8x128xf32>
    tpu.vector_store %arg6[%c0_15, %c0_16], %54 {strides = array<i32>} : memref<8x128xf32, #tpu.memory_space<vmem>>, vector<8x128xf32>,
    return
  }
  func.func @transform_0(%arg0: i32, %arg1: i32) -> (i32, i32) {
    %c0_i32 = arith.constant 0 : i32
    %c0_i32_0 = arith.constant 0 : i32
    return %arg0, %c0_i32 : i32, i32
  }
  func.func @transform_1(%arg0: i32, %arg1: i32) -> (i32, i32) {
    %c0_i32 = arith.constant 0 : i32
    %c0_i32_0 = arith.constant 0 : i32
    return %c0_i32, %arg1 : i32, i32
  }
  func.func @transform_2(%arg0: i32, %arg1: i32) -> (i32, i32) {
    %c0_i32 = arith.constant 0 : i32
    %c0_i32_0 = arith.constant 0 : i32
    return %arg0, %c0_i32 : i32, i32
  }
  func.func @transform_3(%arg0: i32, %arg1: i32) -> (i32, i32) {
    %c0_i32 = arith.constant 0 : i32
    %c0_i32_0 = arith.constant 0 : i32
    return %c0_i32, %arg1 : i32, i32
  }
  func.func @transform_4(%arg0: i32, %arg1: i32) -> (i32, i32) {
    %c0_i32 = arith.constant 0 : i32
    %c0_i32_0 = arith.constant 0 : i32
    return %arg0, %c0_i32 : i32, i32
  }
}

</mosaic_0001>

<llo_original>
// kernel: contrastive_loss.1
$region0: #{contrastive_loss.1}
  #allocation0 [shape = 'u32[]', space=smem, size = 0x4, offset = 0x4, fixed_abs, tag = 'smem constant byte address 0x4 - core index']
  #allocation1 [shape = 'u32[144,128]{1,0:T(1,128)}', space=vmem, size = 0x12000, scoped, tag = 'internal scratch']
  %s0 = inlined_call_operand.vmem [shape: bf16[128,128], index: 0, kind: input, shape index: {}]
  %s1 = inlined_call_operand.vmem [shape: bf16[128,128], index: 1, kind: input, shape index: {}]
  %s2 = inlined_call_operand.vmem [shape: s32[128,1], index: 2, kind: input, shape index: {}]
  %s3 = inlined_call_operand.vmem [shape: s32[1,128], index: 3, kind: input, shape index: {}]
  %s4 = inlined_call_operand.vmem [shape: f32[8,128], index: 4, kind: output, shape index: {}]
  %s5 = sld [smem:[#allocation0]]
  $region30: #{contrastive_loss.1} parent=0
    _
  %s7 = ssub.s32 1, %s5
  %s8 = scalar_select 0, %s7, %s5
  // Predicated region
  $region2: #{contrastive_loss.1} parent=0 // pred_check
    _
  $region3: #{contrastive_loss.1} parent=0 // pred_check_branch
    %10 = sbr.rel (0) target = $region5
  $region4: #{contrastive_loss.1} parent=0 // pred_region
    _
  $region5: #{contrastive_loss.1} parent=0 // pred_fallthru
    _
  // Predicated region
  $region6: #{contrastive_loss.1} parent=0 // pred_check
    _
  $region7: #{contrastive_loss.1} parent=0 // pred_check_branch
    %12 = sbr.rel (0) target = $region9
  $region8: #{contrastive_loss.1} parent=0 // pred_region
    _
  $region9: #{contrastive_loss.1} parent=0 // pred_fallthru
    _
  // Predicated region
  $region10: #{contrastive_loss.1} parent=0 // pred_check
    _
  $region11: #{contrastive_loss.1} parent=0 // pred_check_branch
    %14 = sbr.rel (0) target = $region13
  $region12: #{contrastive_loss.1} parent=0 // pred_region
    _
  $region13: #{contrastive_loss.1} parent=0 // pred_fallthru
    _
  // Predicated region
  $region14: #{contrastive_loss.1} parent=0 // pred_check
    _
  $region15: #{contrastive_loss.1} parent=0 // pred_check_branch
    %16 = sbr.rel (0) target = $region17
  $region16: #{contrastive_loss.1} parent=0 // pred_region
    _
  $region17: #{contrastive_loss.1} parent=0 // pred_fallthru
    _
  %p18 = scmp.eq.s32.totalorder 0, 0
  // Predicated region
  $region18: #{contrastive_loss.1} parent=0 // pred_check
    %p19 = pneg %p18
  $region19: #{contrastive_loss.1} parent=0 // pred_check_branch
    %21 = sbr.rel (%p19) target = $region21
  $region20: #{contrastive_loss.1} parent=0 // pred_region
    %22 = vst [vmem:[%s4] sm:$0xff] 0.0
  $region21: #{contrastive_loss.1} parent=0 // pred_fallthru
    _
  %v23 = vld [vmem:[%s0] sm:$0xf]
  %v24 = vld [vmem:[%s0 + $0x4] sm:$0xf]
  %v25 = vld [vmem:[%s0 + $0x8] sm:$0xf]
  %v26 = vld [vmem:[%s0 + $0xc] sm:$0xf]
  %v27 = vld [vmem:[%s0 + $0x10] sm:$0xf]
  %v28 = vld [vmem:[%s0 + $0x14] sm:$0xf]
  %v29 = vld [vmem:[%s0 + $0x18] sm:$0xf]
  %v30 = vld [vmem:[%s0 + $0x1c] sm:$0xf]
  %v31 = vld [vmem:[%s0 + $0x20] sm:$0xf]
  %v32 = vld [vmem:[%s0 + $0x24] sm:$0xf]
  %v33 = vld [vmem:[%s0 + $0x28] sm:$0xf]
  %v34 = vld [vmem:[%s0 + $0x2c] sm:$0xf]
  %v35 = vld [vmem:[%s0 + $0x30] sm:$0xf]
  %v36 = vld [vmem:[%s0 + $0x34] sm:$0xf]
  %v37 = vld [vmem:[%s0 + $0x38] sm:$0xf]
  %v38 = vld [vmem:[%s0 + $0x3c] sm:$0xf]
  %v39 = vld [vmem:[%s1] sm:$0xf]
  %v40 = vld [vmem:[%s1 + $0x4] sm:$0xf]
  %v41 = vld [vmem:[%s1 + $0x8] sm:$0xf]
  %v42 = vld [vmem:[%s1 + $0xc] sm:$0xf]
  %v43 = vld [vmem:[%s1 + $0x10] sm:$0xf]
  %v44 = vld [vmem:[%s1 + $0x14] sm:$0xf]
  %v45 = vld [vmem:[%s1 + $0x18] sm:$0xf]
  %v46 = vld [vmem:[%s1 + $0x1c] sm:$0xf]
  %v47 = vld [vmem:[%s1 + $0x20] sm:$0xf]
  %v48 = vld [vmem:[%s1 + $0x24] sm:$0xf]
  %v49 = vld [vmem:[%s1 + $0x28] sm:$0xf]
  %v50 = vld [vmem:[%s1 + $0x2c] sm:$0xf]
  %v51 = vld [vmem:[%s1 + $0x30] sm:$0xf]
  %v52 = vld [vmem:[%s1 + $0x34] sm:$0xf]
  %v53 = vld [vmem:[%s1 + $0x38] sm:$0xf]
  %v54 = vld [vmem:[%s1 + $0x3c] sm:$0xf]
  %v71 = vunpack.c.l.b16 %v23
  %v72 = vunpack.c.l.b16 %v24
  %v73 = vunpack.c.l.b16 %v25
  %v74 = vunpack.c.l.b16 %v26
  %v75 = vunpack.c.l.b16 %v27
  %v76 = vunpack.c.l.b16 %v28
  %v77 = vunpack.c.l.b16 %v29
  %v78 = vunpack.c.l.b16 %v30
  %v79 = vunpack.c.l.b16 %v31
  %v80 = vunpack.c.l.b16 %v32
  %v81 = vunpack.c.l.b16 %v33
  %v82 = vunpack.c.l.b16 %v34
  %v83 = vunpack.c.l.b16 %v35
  %v84 = vunpack.c.l.b16 %v36
  %v85 = vunpack.c.l.b16 %v37
  %v86 = vunpack.c.l.b16 %v38
  %v87 = vpack.c.b16 %v72, %v71
  %v88 = vpack.c.b16 %v74, %v73
  %v89 = vpack.c.b16 %v76, %v75
  %v90 = vpack.c.b16 %v78, %v77
  %v91 = vpack.c.b16 %v80, %v79
  %v92 = vpack.c.b16 %v82, %v81
  %v93 = vpack.c.b16 %v84, %v83
  %v94 = vpack.c.b16 %v86, %v85
  %v119 = vunpack.c.l.b16 %v39
  %v120 = vunpack.c.l.b16 %v40
  %v121 = vunpack.c.l.b16 %v41
  %v122 = vunpack.c.l.b16 %v42
  %v123 = vunpack.c.l.b16 %v43
  %v124 = vunpack.c.l.b16 %v44
  %v125 = vunpack.c.l.b16 %v45
  %v126 = vunpack.c.l.b16 %v46
  %v127 = vunpack.c.l.b16 %v47
  %v128 = vunpack.c.l.b16 %v48
  %v129 = vunpack.c.l.b16 %v49
  %v130 = vunpack.c.l.b16 %v50
  %v131 = vunpack.c.l.b16 %v51
  %v132 = vunpack.c.l.b16 %v52
  %v133 = vunpack.c.l.b16 %v53
  %v134 = vunpack.c.l.b16 %v54
  %v135 = vpack.c.b16 %v120, %v119
  %v136 = vpack.c.b16 %v122, %v121
  %v137 = vpack.c.b16 %v124, %v123
  %v138 = vpack.c.b16 %v126, %v125
  %v139 = vpack.c.b16 %v128, %v127
  %v140 = vpack.c.b16 %v130, %v129
  %v141 = vpack.c.b16 %v132, %v131
  %v142 = vpack.c.b16 %v134, %v133
  %151 = vmatprep.subr.bf16.mxu0 0
  %152 = vmatpush1.bf16.msra.mxu0 %v135
  %153 = vmatprep.subr.bf16.mxu0 0
  %154 = vmatpush1.bf16.msra.mxu0 %v136
  %155 = vmatprep.subr.bf16.mxu0 0
  %156 = vmatpush1.bf16.msra.mxu0 %v137
  %157 = vmatprep.subr.bf16.mxu0 0
  %158 = vmatpush1.bf16.msra.mxu0 %v138
  %159 = vmatprep.subr.bf16.mxu0 0
  %160 = vmatpush1.bf16.msra.mxu0 %v139
  %161 = vmatprep.subr.bf16.mxu0 0
  %162 = vmatpush1.bf16.msra.mxu0 %v140
  %163 = vmatprep.subr.bf16.mxu0 0
  %164 = vmatpush1.bf16.msra.mxu0 %v141
  %165 = vmatprep.subr.bf16.mxu0 0
  %166 = vmatpush1.bf16.msra.mxu0 %v142
  %167 = vmatprep.subr.bf16.mxu0 0
  %168 = vmatpush1.bf16.msra.mxu0 0
  %169 = vmatprep.subr.bf16.mxu0 0
  %170 = vmatpush1.bf16.msra.mxu0 0
  %171 = vmatprep.subr.bf16.mxu0 0
  %172 = vmatpush1.bf16.msra.mxu0 0
  %173 = vmatprep.subr.bf16.mxu0 0
  %174 = vmatpush1.bf16.msra.mxu0 0
  %175 = vmatprep.subr.bf16.mxu0 0
  %176 = vmatpush1.bf16.msra.mxu0 0
  %177 = vmatprep.subr.bf16.mxu0 0
  %178 = vmatpush1.bf16.msra.mxu0 0
  %179 = vmatprep.subr.bf16.mxu0 0
  %180 = vmatpush1.bf16.msra.mxu0 0
  %181 = vmatprep.subr.bf16.mxu0 0
  %182 = vmatpush1.bf16.msra.mxu0 0
  %183 = vmatprep.mubr.bf16.mxu0 0
  %184 = vmatmul.mubr.bf16.gmra.mrb[0].mxu0 %v87
  %v185 = vpop.f32.mrb[0].mxu0
  %v186 = vadd.f32 0.0, %v185
  %v187 = vpop.f32.mrb[0].mxu0
  %v188 = vpop.f32.mrb[0].mxu0
  %v189 = vadd.f32 0.0, %v188
  %v190 = vpop.f32.mrb[0].mxu0
  %191 = vmatprep.mubr.bf16.mxu0 0
  %192 = vmatmul.mubr.bf16.gmra.mrb[0].mxu0 %v88
  %v193 = vpop.f32.mrb[0].mxu0
  %v194 = vadd.f32 0.0, %v193
  %v195 = vpop.f32.mrb[0].mxu0
  %v196 = vpop.f32.mrb[0].mxu0
  %v197 = vadd.f32 0.0, %v196
  %v198 = vpop.f32.mrb[0].mxu0
  %199 = vmatprep.mubr.bf16.mxu0 0
  %200 = vmatmul.mubr.bf16.gmra.mrb[0].mxu0 %v89
  %v201 = vpop.f32.mrb[0].mxu0
  %v202 = vadd.f32 0.0, %v201
  %v203 = vpop.f32.mrb[0].mxu0
  %v204 = vpop.f32.mrb[0].mxu0
  %v205 = vadd.f32 0.0, %v204
  %v206 = vpop.f32.mrb[0].mxu0
  %207 = vmatprep.mubr.bf16.mxu0 0
  %208 = vmatmul.mubr.bf16.gmra.mrb[0].mxu0 %v90
  %v209 = vpop.f32.mrb[0].mxu0
  %v210 = vadd.f32 0.0, %v209
  %v211 = vpop.f32.mrb[0].mxu0
  %v212 = vpop.f32.mrb[0].mxu0
  %v213 = vadd.f32 0.0, %v212
  %v214 = vpop.f32.mrb[0].mxu0
  %215 = vmatprep.mubr.bf16.mxu0 0
  %216 = vmatmul.mubr.bf16.gmra.mrb[0].mxu0 %v91
  %v217 = vpop.f32.mrb[0].mxu0
  %v218 = vadd.f32 0.0, %v217
  %v219 = vpop.f32.mrb[0].mxu0
  %v220 = vpop.f32.mrb[0].mxu0
  %v221 = vadd.f32 0.0, %v220
  %v222 = vpop.f32.mrb[0].mxu0
  %223 = vmatprep.mubr.bf16.mxu0 0
  %224 = vmatmul.mubr.bf16.gmra.mrb[0].mxu0 %v92
  %v225 = vpop.f32.mrb[0].mxu0
  %v226 = vadd.f32 0.0, %v225
  %v227 = vpop.f32.mrb[0].mxu0
  %v228 = vpop.f32.mrb[0].mxu0
  %v229 = vadd.f32 0.0, %v228
  %v230 = vpop.f32.mrb[0].mxu0
  %231 = vmatprep.mubr.bf16.mxu0 0
  %232 = vmatmul.mubr.bf16.gmra.mrb[0].mxu0 %v93
  %v233 = vpop.f32.mrb[0].mxu0
  %v234 = vadd.f32 0.0, %v233
  %v235 = vpop.f32.mrb[0].mxu0
  %v236 = vpop.f32.mrb[0].mxu0
  %v237 = vadd.f32 0.0, %v236
  %v238 = vpop.f32.mrb[0].mxu0
  %239 = vmatprep.mubr.bf16.mxu0 0
  %240 = vmatmul.mubr.bf16.gmra.mrb[0].mxu0 %v94
  %v241 = vpop.f32.mrb[0].mxu0
  %v242 = vadd.f32 0.0, %v241
  %v243 = vpop.f32.mrb[0].mxu0
  %v244 = vpop.f32.mrb[0].mxu0
  %v245 = vadd.f32 0.0, %v244
  %v246 = vpop.f32.mrb[0].mxu0
  %247 = vdwg.mxu0
  %v248 = vld [vmem:[%s2] sm:$0xff]
  %v249 = vld [vmem:[%s2 + $0x8] sm:$0xff]
  %v250 = vld [vmem:[%s2 + $0x10] sm:$0xff]
  %v251 = vld [vmem:[%s2 + $0x18] sm:$0xff]
  %v252 = vld [vmem:[%s2 + $0x20] sm:$0xff]
  %v253 = vld [vmem:[%s2 + $0x28] sm:$0xff]
  %v254 = vld [vmem:[%s2 + $0x30] sm:$0xff]
  %v255 = vld [vmem:[%s2 + $0x38] sm:$0xff]
  %v256 = vld [vmem:[%s2 + $0x40] sm:$0xff]
  %v257 = vld [vmem:[%s2 + $0x48] sm:$0xff]
  %v258 = vld [vmem:[%s2 + $0x50] sm:$0xff]
  %v259 = vld [vmem:[%s2 + $0x58] sm:$0xff]
  %v260 = vld [vmem:[%s2 + $0x60] sm:$0xff]
  %v261 = vld [vmem:[%s2 + $0x68] sm:$0xff]
  %v262 = vld [vmem:[%s2 + $0x70] sm:$0xff]
  %v263 = vld [vmem:[%s2 + $0x78] sm:$0xff]
  %v264 = vld [vmem:[%s3] sm:$0x1]
  %265 = vset.pattern.permute.xlu0 0
  %266 = vperm.xlu0 %265, %v248
  %v267 = vpop.permute.xlu0 %266
  %268 = vset.pattern.permute.xlu0 0
  %269 = vperm.xlu0 %268, %v249
  %v270 = vpop.permute.xlu0 %269
  %271 = vset.pattern.permute.xlu0 0
  %272 = vperm.xlu0 %271, %v250
  %v273 = vpop.permute.xlu0 %272
  %274 = vset.pattern.permute.xlu0 0
  %275 = vperm.xlu0 %274, %v251
  %v276 = vpop.permute.xlu0 %275
  %277 = vset.pattern.permute.xlu0 0
  %278 = vperm.xlu0 %277, %v252
  %v279 = vpop.permute.xlu0 %278
  %280 = vset.pattern.permute.xlu0 0
  %281 = vperm.xlu0 %280, %v253
  %v282 = vpop.permute.xlu0 %281
  %283 = vset.pattern.permute.xlu0 0
  %284 = vperm.xlu0 %283, %v254
  %v285 = vpop.permute.xlu0 %284
  %286 = vset.pattern.permute.xlu0 0
  %287 = vperm.xlu0 %286, %v255
  %v288 = vpop.permute.xlu0 %287
  %289 = vset.pattern.permute.xlu0 0
  %290 = vperm.xlu0 %289, %v256
  %v291 = vpop.permute.xlu0 %290
  %292 = vset.pattern.permute.xlu0 0
  %293 = vperm.xlu0 %292, %v257
  %v294 = vpop.permute.xlu0 %293
  %295 = vset.pattern.permute.xlu0 0
  %296 = vperm.xlu0 %295, %v258
  %v297 = vpop.permute.xlu0 %296
  %298 = vset.pattern.permute.xlu0 0
  %299 = vperm.xlu0 %298, %v259
  %v300 = vpop.permute.xlu0 %299
  %301 = vset.pattern.permute.xlu0 0
  %302 = vperm.xlu0 %301, %v260
  %v303 = vpop.permute.xlu0 %302
  %304 = vset.pattern.permute.xlu0 0
  %305 = vperm.xlu0 %304, %v261
  %v306 = vpop.permute.xlu0 %305
  %307 = vset.pattern.permute.xlu0 0
  %308 = vperm.xlu0 %307, %v262
  %v309 = vpop.permute.xlu0 %308
  %310 = vset.pattern.permute.xlu0 0
  %311 = vperm.xlu0 %310, %v263
  %v312 = vpop.permute.xlu0 %311
  %v313 = vlaneseq
  %v314 = vshrl.u32 %v313, 7
  %v315 = vsub.s32 0, %v314
  %v316 = vrot.slane %v264, %v315
  %vm317 = vcmp.eq.s32.totalorder %v267, %v316
  %vm318 = vcmp.eq.s32.totalorder %v270, %v316
  %vm319 = vcmp.eq.s32.totalorder %v273, %v316
  %vm320 = vcmp.eq.s32.totalorder %v276, %v316
  %vm321 = vcmp.eq.s32.totalorder %v279, %v316
  %vm322 = vcmp.eq.s32.totalorder %v282, %v316
  %vm323 = vcmp.eq.s32.totalorder %v285, %v316
  %vm324 = vcmp.eq.s32.totalorder %v288, %v316
  %vm325 = vcmp.eq.s32.totalorder %v291, %v316
  %vm326 = vcmp.eq.s32.totalorder %v294, %v316
  %vm327 = vcmp.eq.s32.totalorder %v297, %v316
  %vm328 = vcmp.eq.s32.totalorder %v300, %v316
  %vm329 = vcmp.eq.s32.totalorder %v303, %v316
  %vm330 = vcmp.eq.s32.totalorder %v306, %v316
  %vm331 = vcmp.eq.s32.totalorder %v309, %v316
  %vm332 = vcmp.eq.s32.totalorder %v312, %v316
  %vm333 = vcmp.lt.f32.partialorder %v186, 1.0
  %vm334 = vcmp.lt.f32.partialorder %v189, 1.0
  %vm335 = vcmp.lt.f32.partialorder %v194, 1.0
  %vm336 = vcmp.lt.f32.partialorder %v197, 1.0
  %vm337 = vcmp.lt.f32.partialorder %v202, 1.0
  %vm338 = vcmp.lt.f32.partialorder %v205, 1.0
  %vm339 = vcmp.lt.f32.partialorder %v210, 1.0
  %vm340 = vcmp.lt.f32.partialorder %v213, 1.0
  %vm341 = vcmp.lt.f32.partialorder %v218, 1.0
  %vm342 = vcmp.lt.f32.partialorder %v221, 1.0
  %vm343 = vcmp.lt.f32.partialorder %v226, 1.0
  %vm344 = vcmp.lt.f32.partialorder %v229, 1.0
  %vm345 = vcmp.lt.f32.partialorder %v234, 1.0
  %vm346 = vcmp.lt.f32.partialorder %v237, 1.0
  %vm347 = vcmp.lt.f32.partialorder %v242, 1.0
  %vm348 = vcmp.lt.f32.partialorder %v245, 1.0
  %v349 = vsub.f32 1.0, %v186
  %v350 = vsub.f32 1.0, %v189
  %v351 = vsub.f32 1.0, %v194
  %v352 = vsub.f32 1.0, %v197
  %v353 = vsub.f32 1.0, %v202
  %v354 = vsub.f32 1.0, %v205
  %v355 = vsub.f32 1.0, %v210
  %v356 = vsub.f32 1.0, %v213
  %v357 = vsub.f32 1.0, %v218
  %v358 = vsub.f32 1.0, %v221
  %v359 = vsub.f32 1.0, %v226
  %v360 = vsub.f32 1.0, %v229
  %v361 = vsub.f32 1.0, %v234
  %v362 = vsub.f32 1.0, %v237
  %v363 = vsub.f32 1.0, %v242
  %v364 = vsub.f32 1.0, %v245
  %v365 = vsel %vm333, %v349, 0.0
  %v366 = vsel %vm334, %v350, 0.0
  %v367 = vsel %vm335, %v351, 0.0
  %v368 = vsel %vm336, %v352, 0.0
  %v369 = vsel %vm337, %v353, 0.0
  %v370 = vsel %vm338, %v354, 0.0
  %v371 = vsel %vm339, %v355, 0.0
  %v372 = vsel %vm340, %v356, 0.0
  %v373 = vsel %vm341, %v357, 0.0
  %v374 = vsel %vm342, %v358, 0.0
  %v375 = vsel %vm343, %v359, 0.0
  %v376 = vsel %vm344, %v360, 0.0
  %v377 = vsel %vm345, %v361, 0.0
  %v378 = vsel %vm346, %v362, 0.0
  %v379 = vsel %vm347, %v363, 0.0
  %v380 = vsel %vm348, %v364, 0.0
  %vm381 = vcmp.gt.f32.partialorder %v186, 0.3
  %vm382 = vcmp.gt.f32.partialorder %v189, 0.3
  %vm383 = vcmp.gt.f32.partialorder %v194, 0.3
  %vm384 = vcmp.gt.f32.partialorder %v197, 0.3
  %vm385 = vcmp.gt.f32.partialorder %v202, 0.3
  %vm386 = vcmp.gt.f32.partialorder %v205, 0.3
  %vm387 = vcmp.gt.f32.partialorder %v210, 0.3
  %vm388 = vcmp.gt.f32.partialorder %v213, 0.3
  %vm389 = vcmp.gt.f32.partialorder %v218, 0.3
  %vm390 = vcmp.gt.f32.partialorder %v221, 0.3
  %vm391 = vcmp.gt.f32.partialorder %v226, 0.3
  %vm392 = vcmp.gt.f32.partialorder %v229, 0.3
  %vm393 = vcmp.gt.f32.partialorder %v234, 0.3
  %vm394 = vcmp.gt.f32.partialorder %v237, 0.3
  %vm395 = vcmp.gt.f32.partialorder %v242, 0.3
  %vm396 = vcmp.gt.f32.partialorder %v245, 0.3
  %v397 = vsel %vm381, %v186, 0.0
  %v398 = vsel %vm382, %v189, 0.0
  %v399 = vsel %vm383, %v194, 0.0
  %v400 = vsel %vm384, %v197, 0.0
  %v401 = vsel %vm385, %v202, 0.0
  %v402 = vsel %vm386, %v205, 0.0
  %v403 = vsel %vm387, %v210, 0.0
  %v404 = vsel %vm388, %v213, 0.0
  %v405 = vsel %vm389, %v218, 0.0
  %v406 = vsel %vm390, %v221, 0.0
  %v407 = vsel %vm391, %v226, 0.0
  %v408 = vsel %vm392, %v229, 0.0
  %v409 = vsel %vm393, %v234, 0.0
  %v410 = vsel %vm394, %v237, 0.0
  %v411 = vsel %vm395, %v242, 0.0
  %v412 = vsel %vm396, %v245, 0.0
  %v413 = vsel %vm317, %v365, %v397
  %v414 = vsel %vm318, %v366, %v398
  %v415 = vsel %vm319, %v367, %v399
  %v416 = vsel %vm320, %v368, %v400
  %v417 = vsel %vm321, %v369, %v401
  %v418 = vsel %vm322, %v370, %v402
  %v419 = vsel %vm323, %v371, %v403
  %v420 = vsel %vm324, %v372, %v404
  %v421 = vsel %vm325, %v373, %v405
  %v422 = vsel %vm326, %v374, %v406
  %v423 = vsel %vm327, %v375, %v407
  %v424 = vsel %vm328, %v376, %v408
  %v425 = vsel %vm329, %v377, %v409
  %v426 = vsel %vm330, %v378, %v410
  %v427 = vsel %vm331, %v379, %v411
  %v428 = vsel %vm332, %v380, %v412
  %v429 = vadd.f32 %v413, %v414
  %v430 = vadd.f32 %v429, %v415
  %v431 = vadd.f32 %v430, %v416
  %v432 = vadd.f32 %v431, %v417
  %v433 = vadd.f32 %v432, %v418
  %v434 = vadd.f32 %v433, %v419
  %v435 = vadd.f32 %v434, %v420
  %v436 = vadd.f32 %v435, %v421
  %v437 = vadd.f32 %v436, %v422
  %v438 = vadd.f32 %v437, %v423
  %v439 = vadd.f32 %v438, %v424
  %v440 = vadd.f32 %v439, %v425
  %v441 = vadd.f32 %v440, %v426
  %v442 = vadd.f32 %v441, %v427
  %v443 = vadd.f32 %v442, %v428
  %v444 = vld [vmem:[%s4] sm:$0xff]
  %v445 = vadd.f32 %v444, %v443
  %446 = vst [vmem:[%s4] sm:$0xff] %v445
  // Predicated region
  $region22: #{contrastive_loss.1} parent=0 // pred_check
    _
  $region23: #{contrastive_loss.1} parent=0 // pred_check_branch
    %448 = sbr.rel (0) target = $region25
  $region24: #{contrastive_loss.1} parent=0 // pred_region
    _
  $region25: #{contrastive_loss.1} parent=0 // pred_fallthru
    _
  // Predicated region
  $region26: #{contrastive_loss.1} parent=0 // pred_check
    _
  $region27: #{contrastive_loss.1} parent=0 // pred_check_branch
    %450 = sbr.rel (0) target = $region29
  $region28: #{contrastive_loss.1} parent=0 // pred_region
    _
  $region29: #{contrastive_loss.1} parent=0 // pred_fallthru
    _

</llo_original>
